<compile_context>
chip_gen: v7x
topology: tpu7x:2x2x1
jax: 0.10.0
libtpu: 0.0.40
codegen_flags: <defaults>
</compile_context>

<pallas_src>
import functools

import jax
import jax.numpy as jnp
from jax import lax
from jax.experimental import pallas as pl
from jax.experimental.pallas import tpu as pltpu

V_THRESHOLD = 1.0
BN_EPS = 1e-5


# ------------------------------ fused SCN kernel ------------------------------
def _scn_fused_kernel(x_ref, m_ref, shift_ref, out_ref, v_ref, *, tau, HP):
    """One (batch-tile, time-step) grid point.

    x_ref    : (1, B, HP, Kin)   f32   input current, h-parity packed lanes
    m_ref    : (3, Kin, Kout)    bf16  folded depthwise+pointwise+BN matrices
    shift_ref: (1, Kout)         f32   folded conv biases + BN shift
    out_ref  : (1, B, HP, Kout)  f32
    v_ref    : (B, HP, Kin)      f32   LIF membrane potential (carried over T)
    """
    t = pl.program_id(1)

    @pl.when(t == 0)
    def _():
        v_ref[...] = jnp.zeros_like(v_ref)   # fresh membrane state per batch tile

    B, _, kin = v_ref.shape
    kout = out_ref.shape[3]

    # ---- LIF (decay_input=False, v_reset=0, v_th=1); state carried across T ----
    v = v_ref[...] * (1.0 - 1.0 / tau) + x_ref[0]
    fired = v >= V_THRESHOLD
    v_ref[...] = jnp.where(fired, 0.0, v)             # hard reset to v_reset = 0

    # dropout == Identity (every_node_dropout=False)

    # ---- depthwise 3x3 + pointwise 1x1 + BN as 3 bf16 lane-dense MXU matmuls ----
    # Vertical (+-1 pair-row) taps come from XLU sublane rolls + an edge-row mask
    # (no halo scratch, no misaligned sublane stores/loads).  The mask also kills
    # cross-image leakage of the flattened (B*HP) row axis.
    spike = fired.astype(jnp.float32).reshape(B * HP, kin)      # exact 0/1
    row = lax.broadcasted_iota(jnp.int32, spike.shape, 0) % HP
    up = jnp.where(row == 0, 0.0, pltpu.roll(spike, 1, axis=0))           # row-1
    down = jnp.where(row == HP - 1, 0.0,
                     pltpu.roll(spike, B * HP - 1, axis=0))               # row+1

    acc = jnp.dot(up.astype(jnp.bfloat16), m_ref[0],
                  preferred_element_type=jnp.float32)
    acc = acc + jnp.dot(spike.astype(jnp.bfloat16), m_ref[1],
                        preferred_element_type=jnp.float32)
    acc = acc + jnp.dot(down.astype(jnp.bfloat16), m_ref[2],
                        preferred_element_type=jnp.float32)
    acc = acc + shift_ref[...]                         # folded biases + BN shift (f32)
    out_ref[0] = acc.reshape(B, HP, kout).astype(out_ref.dtype)


# --------------------- host-side folding of conv + bias + BN -------------------
def fold_scn_params(params, W):
    """Fold depthwise horizontal taps, pointwise 1x1, both conv biases and eval BN
    into three bf16 lane matrices M[dr] of shape (2*W*Cin, 2*W*Cout) -- one per
    vertical pair-row offset dr-1 in {-1,0,+1} -- plus one f32 (1, 2*W*Cout) shift.

    Lane layout: lane = (h % 2) * W*C + w * C + c.  With input pair-row
    r_i = r_o + dr - 1, the vertical conv tap is dh = 2*(dr-1) + p_in - p_out + 1
    (only kept when 0 <= dh <= 2); horizontal taps are the banded eye() folds.
    """
    dw_w = params["dw_w"]              # (3, 3, Cin)  [dh, dw, c]
    pw_w = params["pw_w"]              # (Cin, Cout)
    scale = params["bn_scale"][0]      # (Cout,)
    shift = params["bn_shift"][0]      # (Cout,)
    Cin, Cout = pw_w.shape

    pw_scaled = pw_w * scale[None, :]                                      # fold BN scale
    bias = (params["dw_b"][0] @ pw_w + params["pw_b"][0]) * scale + shift  # (Cout,)

    mats = []
    for dr in range(3):                      # input pair-row = output pair-row + dr - 1
        m = jnp.zeros((2, W, Cin, 2, W, Cout), jnp.float32)
        for p_in in range(2):
            for p_out in range(2):
                dh = 2 * (dr - 1) + p_in - p_out + 1
                if not 0 <= dh <= 2:
                    continue
                blk = jnp.zeros((W, Cin, W, Cout), jnp.float32)
                for dw in range(3):
                    # output column w reads input column wp = w + dw - 1 (zero outside)
                    sel = jnp.eye(W, k=1 - dw, dtype=jnp.float32)          # [wp, w]
                    blk = blk + jnp.einsum("pw,i,io->piwo", sel, dw_w[dh, dw], pw_scaled)
                m = m.at[p_in, :, :, p_out].add(blk)
        mats.append(m.reshape(2 * W * Cin, 2 * W * Cout))
    lane_mats = jnp.stack(mats, 0).astype(jnp.bfloat16)       # (3, 2WCin, 2WCout) bf16
    shift_row = jnp.tile(bias, (2 * W,))[None, :]              # (1, 2WCout) f32
    return lane_mats, shift_row


# --------------------------- lane-layout SCN forward ----------------------------
def scn_forward_lane(x_lane, lane_mats, shift_row, *, tau, block_n=64):
    """Fused SCN on the parity-packed lane layout.

    x_lane: [T, N, H//2, 2*W*Cin] f32  ->  [T, N, H//2, 2*W*Cout] f32.
    Chain consecutive SCN blocks in this layout (call this directly) so the NCHW
    boundary transposes in scn_forward are paid only once per model, not per layer.
    """
    T, N, HP, kin = x_lane.shape
    kout = lane_mats.shape[2]

    # Batch tile B: big enough to amortize the ~0.35us per-grid-step overhead, but
    # capped at N//2 so n_tiles >= 2 and the "parallel" axis splits across the two
    # v7x TensorCores.  VMEM/step ~ 4*B*HP*(2*(kin+kout) + kin) + 6*kin*kout bytes;
    # at block_n=64 and these sizes that is a few MiB, well under the 16/32 MiB
    # default scoped-VMEM limits (set CompilerParams(vmem_limit_bytes=...) if raised).
    B = max(1, min(block_n, N // 2))
    n_tiles = pl.cdiv(N, B)
    Np = n_tiles * B
    if Np != N:        # zero-pad batch: LIF(0) never spikes; padded rows sliced off
        x_lane = jnp.pad(x_lane, ((0, 0), (0, Np - N), (0, 0), (0, 0)))

    kernel = functools.partial(_scn_fused_kernel, tau=tau, HP=HP)
    out = pl.pallas_call(
        kernel,
        out_shape=jax.ShapeDtypeStruct((T, Np, HP, kout), jnp.float32),
        grid_spec=pltpu.PrefetchScalarGridSpec(
            num_scalar_prefetch=0,
            grid=(n_tiles, T),                   # T innermost: carries the LIF state
            in_specs=[
                pl.BlockSpec((1, B, HP, kin), lambda n, t: (t, n, 0, 0)),
                pl.BlockSpec((3, kin, kout), lambda n, t: (0, 0, 0)),
                pl.BlockSpec((1, kout), lambda n, t: (0, 0)),
            ],
            out_specs=pl.BlockSpec((1, B, HP, kout), lambda n, t: (t, n, 0, 0)),
            scratch_shapes=[
                pltpu.VMEM((B, HP, kin), jnp.float32),     # membrane potential v
            ],
        ),
        compiler_params=pltpu.CompilerParams(
            dimension_semantics=("parallel", "arbitrary"),
        ),
    )(x_lane, lane_mats, shift_row)
    return out[:, :N] if Np != N else out


# ------------------------- NCHW boundary wrapper (SCN) --------------------------
@functools.partial(jax.jit, static_argnames=("tau", "block_n", "stride"))
def scn_forward(x, params, *, tau, block_n=64, stride=1):
    """x: [T, N, Cin, H, W] (PyTorch layout). Returns [T, N, Cout, H, W]."""
    assert stride == 1  # TODO(synk): stride > 1 depthwise conv not implemented
    T, N, Cin, H, W = x.shape
    Cout = params["pw_w"].shape[1]
    assert H % 16 == 0, "H must be a multiple of 16 (h-parity packing + 8-sublane tiles)"
    # TODO(synk): general H needs an unpacked fallback layout.

    # Boundary relayout NCHW -> [T, N, H/2, 2*W*Cin] (lane = (h%2)*W*Cin + w*Cin + c).
    x_lane = jnp.transpose(x, (0, 1, 3, 4, 2)).reshape(T, N, H // 2, 2 * W * Cin)

    lane_mats, shift_row = fold_scn_params(params, W)
    out = scn_forward_lane(x_lane, lane_mats, shift_row, tau=tau, block_n=block_n)

    out = out.reshape(T, N, H // 2, 2, W, Cout)
    return jnp.transpose(out, (0, 1, 5, 2, 3, 4)).reshape(T, N, Cout, H, W)


# ----------------------------- deterministic params ----------------------------
def make_params(key, cin, cout):
    ks = jax.random.split(key, 6)
    dw_w = 0.2 * jax.random.normal(ks[0], (3, 3, cin), jnp.float32)     # HWI
    dw_b = 0.1 * jax.random.normal(ks[1], (1, cin), jnp.float32)
    pw_w = 0.2 * jax.random.normal(ks[2], (cin, cout), jnp.float32)     # (Cin, Cout)
    pw_b = 0.1 * jax.random.normal(ks[3], (1, cout), jnp.float32)
    gamma = 1.0 + 0.1 * jax.random.normal(ks[4], (cout,), jnp.float32)
    beta = 0.1 * jax.random.normal(ks[5], (cout,), jnp.float32)
    running_mean = 0.05 * jnp.arange(cout, dtype=jnp.float32)
    running_var = 1.0 + 0.02 * jnp.arange(cout, dtype=jnp.float32)
    scale = gamma / jnp.sqrt(running_var + BN_EPS)
    shift = beta - running_mean * scale
    return dict(dw_w=dw_w, dw_b=dw_b, pw_w=pw_w, pw_b=pw_b,
                bn_scale=scale[None, :], bn_shift=shift[None, :])


# ------------------------------- pure-JAX reference ----------------------------
def scn_reference(x, params, tau):
    T, N, C, H, W = x.shape

    def step(v, xt):
        v = v * (1.0 - 1.0 / tau) + xt
        s = (v >= V_THRESHOLD).astype(xt.dtype)
        return v * (1.0 - s), s

    _, spikes = lax.scan(step, jnp.zeros((N, C, H, W), x.dtype), x)
    xs = spikes.reshape(T * N, C, H, W)
    dw_oihw = jnp.transpose(params["dw_w"], (2, 0, 1))[:, None]          # (Cin,1,3,3)
    y = lax.conv_general_dilated(xs, dw_oihw, (1, 1), "SAME",
                                 dimension_numbers=("NCHW", "OIHW", "NCHW"),
                                 feature_group_count=C)
    y = y + params["dw_b"][0][None, :, None, None]
    pw_oihw = jnp.transpose(params["pw_w"], (1, 0))[:, :, None, None]    # (Cout,Cin,1,1)
    y = lax.conv_general_dilated(y, pw_oihw, (1, 1), "VALID",
                                 dimension_numbers=("NCHW", "OIHW", "NCHW"))
    y = y + params["pw_b"][0][None, :, None, None]
    y = y * params["bn_scale"][0][None, :, None, None] + \
        params["bn_shift"][0][None, :, None, None]
    return y.reshape(T, N, -1, H, W)


if __name__ == "__main__":
    T, N, Cin, Cout, H, W = 4, 4, 4, 8, 16, 16
    tau = 2.0
    key = jax.random.PRNGKey(0)
    kx, kp = jax.random.split(key)
    x = 1.5 * jax.random.normal(kx, (T, N, Cin, H, W), jnp.float32)
    params = make_params(kp, Cin, Cout)

    out = jax.block_until_ready(scn_forward(x, params, tau=tau))
    ref = jax.block_until_ready(scn_reference(x, params, tau))

    assert out.shape == (T, N, Cout, H, W), out.shape
    # bf16 folded weights (spikes are exact 0/1) -> slightly looser tolerance than f32.
    assert jnp.allclose(out, ref, rtol=5e-3, atol=5e-3), \
        float(jnp.max(jnp.abs(out - ref)))
    print("KERNEL_OK")
</pallas_src>

<mosaic_0001>
module attributes {stable_mosaic.version = 11 : i64} {
  func.func @_scn_fused_kernel(%arg0: i32, %arg1: i32, %arg2: memref<1x2x8x128xf32, #tpu.memory_space<vmem>>, %arg3: memref<3x128x256xbf16, #tpu.memory_space<vmem>>, %arg4: memref<1x256xf32, #tpu.memory_space<vmem>>, %arg5: memref<1x2x8x256xf32, #tpu.memory_space<vmem>>, %arg6: memref<2x8x128xf32, #tpu.memory_space<vmem>>) attributes {dimension_semantics = [#tpu.dimension_semantics<parallel>, #tpu.dimension_semantics<arbitrary>], iteration_bounds = array<i64: 2, 4>, scalar_prefetch = 0 : i64, scratch_operands = 1 : i64, tpu.core_type = #tpu.core_type<tc>, window_params = [{transform_indices = @transform_0, window_bounds = array<i64: 1, 2, 8, 128>}, {pipeline_mode = #tpu.pipeline_mode<synchronous>, transform_indices = @transform_1, window_bounds = array<i64: 3, 128, 256>}, {pipeline_mode = #tpu.pipeline_mode<synchronous>, transform_indices = @transform_2, window_bounds = array<i64: 1, 256>}, {transform_indices = @transform_3, window_bounds = array<i64: 1, 2, 8, 256>}]} {
    %c0_i32 = arith.constant 0 : i32
    %0 = arith.cmpi eq, %arg1, %c0_i32 : i32
    %1 = arith.extui %0 : i1 to i32
    %c0_i32_0 = arith.constant 0 : i32
    %2 = arith.cmpi ne, %1, %c0_i32_0 : i32
    scf.if %2 {
      %cst_36 = arith.constant 0.000000e+00 : f32
      %65 = vector.broadcast %cst_36 : f32 to vector<2x8x128xf32>
      %c0_37 = arith.constant 0 : index
      %c0_38 = arith.constant 0 : index
      %c0_39 = arith.constant 0 : index
      %66 = vector.load %arg6[%c0_37, %c0_38, %c0_39] : memref<2x8x128xf32, #tpu.memory_space<vmem>>, vector<2x8x128xf32>
      tpu.vector_store %arg6[%c0_37, %c0_38, %c0_39], %65 {strides = array<i32>} : memref<2x8x128xf32, #tpu.memory_space<vmem>>, vector<2x8x128xf32>,
    } else {
    }
    %c0 = arith.constant 0 : index
    %c0_1 = arith.constant 0 : index
    %c0_2 = arith.constant 0 : index
    %3 = vector.load %arg6[%c0, %c0_1, %c0_2] : memref<2x8x128xf32, #tpu.memory_space<vmem>>, vector<2x8x128xf32>
    %cst = arith.constant 5.000000e-01 : f32
    %4 = vector.broadcast %cst : f32 to vector<2x8x128xf32>
    %5 = arith.mulf %3, %4 : vector<2x8x128xf32>
    %c0_3 = arith.constant 0 : index
    %c0_4 = arith.constant 0 : index
    %c0_5 = arith.constant 0 : index
    %c0_6 = arith.constant 0 : index
    %6 = vector.load %arg2[%c0_3, %c0_4, %c0_5, %c0_6] : memref<1x2x8x128xf32, #tpu.memory_space<vmem>>, vector<1x2x8x128xf32>
    %7 = vector.shape_cast %6 : vector<1x2x8x128xf32> to vector<2x8x128xf32>
    %8 = arith.addf %5, %7 : vector<2x8x128xf32>
    %cst_7 = arith.constant 1.000000e+00 : f32
    %9 = vector.broadcast %cst_7 : f32 to vector<2x8x128xf32>
    %10 = arith.cmpf oge, %8, %9 : vector<2x8x128xf32>
    %cst_8 = arith.constant 0.000000e+00 : f32
    %11 = vector.broadcast %cst_8 : f32 to vector<2x8x128xf32>
    %12 = arith.select %10, %11, %8 : vector<2x8x128xi1>, vector<2x8x128xf32>
    %c0_9 = arith.constant 0 : index
    %c0_10 = arith.constant 0 : index
    %c0_11 = arith.constant 0 : index
    %13 = vector.load %arg6[%c0_9, %c0_10, %c0_11] : memref<2x8x128xf32, #tpu.memory_space<vmem>>, vector<2x8x128xf32>
    tpu.vector_store %arg6[%c0_9, %c0_10, %c0_11], %12 {strides = array<i32>} : memref<2x8x128xf32, #tpu.memory_space<vmem>>, vector<2x8x128xf32>,
    %14 = arith.extui %10 : vector<2x8x128xi1> to vector<2x8x128xi32>
    %15 = arith.sitofp %14 : vector<2x8x128xi32> to vector<2x8x128xf32>
    %16 = vector.shape_cast %15 : vector<2x8x128xf32> to vector<16x128xf32>
    %17 = tpu.iota {dimensions = array<i32: 0>} : vector<16x128xi32>
    %c8_i32 = arith.constant 8 : i32
    %c0_i32_12 = arith.constant 0 : i32
    %18 = arith.cmpi eq, %c8_i32, %c0_i32_12 : i32
    %c1_i32 = arith.constant 1 : i32
    %19 = arith.select %18, %c1_i32, %c8_i32 : i32
    %20 = vector.broadcast %19 : i32 to vector<16x128xi32>
    %21 = arith.remsi %17, %20 : vector<16x128xi32>
    %c0_i32_13 = arith.constant 0 : i32
    %22 = vector.broadcast %c0_i32_13 : i32 to vector<16x128xi32>
    %23 = arith.cmpi ne, %21, %22 : vector<16x128xi32>
    %c0_i32_14 = arith.constant 0 : i32
    %24 = vector.broadcast %c0_i32_14 : i32 to vector<16x128xi32>
    %25 = arith.cmpi slt, %21, %24 : vector<16x128xi32>
    %c0_i32_15 = arith.constant 0 : i32
    %26 = arith.cmpi slt, %19, %c0_i32_15 : i32
    %27 = vector.broadcast %26 : i1 to vector<16x128xi1>
    %28 = vector.broadcast %27 : vector<16x128xi1> to vector<16x128xi1>
    %29 = arith.xori %25, %28 : vector<16x128xi1>
    %30 = arith.andi %29, %23 : vector<16x128xi1>
    %31 = vector.broadcast %19 : i32 to vector<16x128xi32>
    %32 = arith.addi %21, %31 : vector<16x128xi32>
    %33 = arith.select %30, %32, %21 : vector<16x128xi1>, vector<16x128xi32>
    %c0_i32_16 = arith.constant 0 : i32
    %34 = vector.broadcast %c0_i32_16 : i32 to vector<16x128xi32>
    %35 = arith.cmpi eq, %33, %34 : vector<16x128xi32>
    %c1_i32_17 = arith.constant 1 : i32
    %36 = tpu.dynamic_rotate %16 by %c1_i32_17 dim 0 : vector<16x128xf32>, i32 -> vector<16x128xf32>
    %cst_18 = arith.constant 0.000000e+00 : f32
    %37 = vector.broadcast %cst_18 : f32 to vector<16x128xf32>
    %38 = arith.select %35, %37, %36 : vector<16x128xi1>, vector<16x128xf32>
    %c7_i32 = arith.constant 7 : i32
    %39 = vector.broadcast %c7_i32 : i32 to vector<16x128xi32>
    %40 = arith.cmpi eq, %33, %39 : vector<16x128xi32>
    %c15_i32 = arith.constant 15 : i32
    %41 = tpu.dynamic_rotate %16 by %c15_i32 dim 0 : vector<16x128xf32>, i32 -> vector<16x128xf32>
    %cst_19 = arith.constant 0.000000e+00 : f32
    %42 = vector.broadcast %cst_19 : f32 to vector<16x128xf32>
    %43 = arith.select %40, %42, %41 : vector<16x128xi1>, vector<16x128xf32>
    %44 = arith.truncf %38 : vector<16x128xf32> to vector<16x128xbf16>
    %c0_20 = arith.constant 0 : index
    %c0_21 = arith.constant 0 : index
    %c0_22 = arith.constant 0 : index
    %45 = vector.load %arg3[%c0_20, %c0_21, %c0_22] : memref<3x128x256xbf16, #tpu.memory_space<vmem>>, vector<1x128x256xbf16>
    %46 = vector.shape_cast %45 : vector<1x128x256xbf16> to vector<128x256xbf16>
    %cst_23 = arith.constant dense<0.000000e+00> : vector<16x256xf32>
    %47 = tpu.matmul %44, %46, %cst_23 {dimension_numbers = #tpu.dot_dimension_numbers<[1], [0], [0], [1], [0, 0, 1, 1], [], []>} : vector<16x128xbf16>, vector<128x256xbf16>, vector<16x256xf32> -> vector<16x256xf32>
    %48 = arith.truncf %16 : vector<16x128xf32> to vector<16x128xbf16>
    %c1 = arith.constant 1 : index
    %c0_24 = arith.constant 0 : index
    %c0_25 = arith.constant 0 : index
    %49 = vector.load %arg3[%c1, %c0_24, %c0_25] : memref<3x128x256xbf16, #tpu.memory_space<vmem>>, vector<1x128x256xbf16>
    %50 = vector.shape_cast %49 : vector<1x128x256xbf16> to vector<128x256xbf16>
    %cst_26 = arith.constant dense<0.000000e+00> : vector<16x256xf32>
    %51 = tpu.matmul %48, %50, %cst_26 {dimension_numbers = #tpu.dot_dimension_numbers<[1], [0], [0], [1], [0, 0, 1, 1], [], []>} : vector<16x128xbf16>, vector<128x256xbf16>, vector<16x256xf32> -> vector<16x256xf32>
    %52 = arith.addf %47, %51 : vector<16x256xf32>
    %53 = arith.truncf %43 : vector<16x128xf32> to vector<16x128xbf16>
    %c2 = arith.constant 2 : index
    %c0_27 = arith.constant 0 : index
    %c0_28 = arith.constant 0 : index
    %54 = vector.load %arg3[%c2, %c0_27, %c0_28] : memref<3x128x256xbf16, #tpu.memory_space<vmem>>, vector<1x128x256xbf16>
    %55 = vector.shape_cast %54 : vector<1x128x256xbf16> to vector<128x256xbf16>
    %cst_29 = arith.constant dense<0.000000e+00> : vector<16x256xf32>
    %56 = tpu.matmul %53, %55, %cst_29 {dimension_numbers = #tpu.dot_dimension_numbers<[1], [0], [0], [1], [0, 0, 1, 1], [], []>} : vector<16x128xbf16>, vector<128x256xbf16>, vector<16x256xf32> -> vector<16x256xf32>
    %57 = arith.addf %52, %56 : vector<16x256xf32>
    %c0_30 = arith.constant 0 : index
    %c0_31 = arith.constant 0 : index
    %58 = vector.load %arg4[%c0_30, %c0_31] : memref<1x256xf32, #tpu.memory_space<vmem>>, vector<1x256xf32>
    %59 = vector.broadcast %58 : vector<1x256xf32> to vector<16x256xf32>
    %60 = arith.addf %57, %59 : vector<16x256xf32>
    %61 = vector.shape_cast %60 : vector<16x256xf32> to vector<2x8x256xf32>
    %c0_32 = arith.constant 0 : index
    %c0_33 = arith.constant 0 : index
    %c0_34 = arith.constant 0 : index
    %c0_35 = arith.constant 0 : index
    %62 = vector.load %arg5[%c0_32, %c0_33, %c0_34, %c0_35] : memref<1x2x8x256xf32, #tpu.memory_space<vmem>>, vector<1x2x8x256xf32>
    %63 = vector.shape_cast %62 : vector<1x2x8x256xf32> to vector<2x8x256xf32>
    %64 = vector.shape_cast %61 : vector<2x8x256xf32> to vector<1x2x8x256xf32>
    tpu.vector_store %arg5[%c0_32, %c0_33, %c0_34, %c0_35], %64 {strides = array<i32>} : memref<1x2x8x256xf32, #tpu.memory_space<vmem>>, vector<1x2x8x256xf32>,
    return
  }
  func.func @transform_0(%arg0: i32, %arg1: i32) -> (i32, i32, i32, i32) {
    %c0_i32 = arith.constant 0 : i32
    %c0_i32_0 = arith.constant 0 : i32
    %c0_i32_1 = arith.constant 0 : i32
    return %arg1, %arg0, %c0_i32, %c0_i32_0 : i32, i32, i32, i32
  }
  func.func @transform_1(%arg0: i32, %arg1: i32) -> (i32, i32, i32) {
    %c0_i32 = arith.constant 0 : i32
    %c0_i32_0 = arith.constant 0 : i32
    %c0_i32_1 = arith.constant 0 : i32
    %c0_i32_2 = arith.constant 0 : i32
    return %c0_i32, %c0_i32_0, %c0_i32_1 : i32, i32, i32
  }
  func.func @transform_2(%arg0: i32, %arg1: i32) -> (i32, i32) {
    %c0_i32 = arith.constant 0 : i32
    %c0_i32_0 = arith.constant 0 : i32
    %c0_i32_1 = arith.constant 0 : i32
    return %c0_i32, %c0_i32_0 : i32, i32
  }
  func.func @transform_3(%arg0: i32, %arg1: i32) -> (i32, i32, i32, i32) {
    %c0_i32 = arith.constant 0 : i32
    %c0_i32_0 = arith.constant 0 : i32
    %c0_i32_1 = arith.constant 0 : i32
    return %arg1, %arg0, %c0_i32, %c0_i32_0 : i32, i32, i32, i32
  }
}

</mosaic_0001>

<llo_original>
// kernel: tile.8
$region0: #{tile.8}
  #allocation0 [shape = 's32[1]{0}', space=sflag, size = 0x4, scoped, tag = 'scoped memory for tile.8']
  %s0 = inlined_call_operand.vmem [shape: f32[8], index: 0, kind: input, shape index: {}]
  %s1 = inlined_call_operand.vmem [shape: f32[32,8], index: 1, kind: output, shape index: {}]
  // Predicated region
  $region2: #{tile.8} parent=0 // pred_check
    _
  $region3: #{tile.8} parent=0 // pred_check_branch
    %3 = sbr.rel (0) target = $region5
  $region4: #{tile.8} parent=0 // pred_region
    _
  $region5: #{tile.8} parent=0 // pred_fallthru
    _
  %v4 = vld [vmem:[%s0] ss:$0 sm:$0xff]
  %5 = vst [vmem:[%s1] sm:$0xff] %v4
  %s6 = scalar_lea.vmem %s1, 8
  %7 = vst [vmem:[%s6] sm:$0xff] %v4
  %s8 = scalar_lea.vmem %s1, 16
  %9 = vst [vmem:[%s8] sm:$0xff] %v4
  %s10 = scalar_lea.vmem %s1, 24
  %11 = vst [vmem:[%s10] sm:$0xff] %v4

// kernel: tile.9
$region0: #{tile.9}
  %s0 = inlined_call_operand.vmem [shape: f32[32,8], index: 0, kind: input, shape index: {}]
  %s1 = inlined_call_operand.vmem [shape: f32[1,256], index: 1, kind: output, shape index: {}]
  $region1: #{tile.9} parent=0
    #allocation0 [shape = 'u8[8192]{0}', space=vmem, size = 0x2000, scoped, tag = 'scoped mem for output reshape']
    %s2 = smov 3
    %v3 = vld [vmem:[%s0] ss:$16 sm:%s2]
    %vm4 = vcmask 64512
    %5 = vst.msk [vmem:[#allocation0] ss:$8 sm:$0x3] %vm4, %v3
    %s6 = scalar_lea.vmem %s0, 15
    %s7 = smov 3
    %v8 = vld [vmem:[%s6] ss:$16 sm:%s7]
    %9 = vrot.lane.b32.xlu0 %v8, 120
    %v10 = vpop.permute.xlu0 %9
    %vm11 = vcmask 1048512
    %12 = vst.msk [vmem:[#allocation0] ss:$8 sm:$0x3] %vm11, %v10
    %s13 = scalar_lea.vmem %s0, 14
    %s14 = smov 3
    %v15 = vld [vmem:[%s13] ss:$16 sm:%s14]
    %16 = vrot.lane.b32.xlu0 %v15, 112
    %v17 = vpop.permute.xlu0 %16
    %vm18 = vcmask 982912
    %19 = vst.msk [vmem:[#allocation0] ss:$8 sm:$0x3] %vm18, %v17
    %s20 = scalar_lea.vmem %s0, 13
    %s21 = smov 3
    %v22 = vld [vmem:[%s20] ss:$16 sm:%s21]
    %23 = vrot.lane.b32.xlu0 %v22, 104
    %v24 = vpop.permute.xlu0 %23
    %vm25 = vcmask 917312
    %26 = vst.msk [vmem:[#allocation0] ss:$8 sm:$0x3] %vm25, %v24
    %s27 = scalar_lea.vmem %s0, 12
    %s28 = smov 3
    %v29 = vld [vmem:[%s27] ss:$16 sm:%s28]
    %30 = vrot.lane.b32.xlu0 %v29, 96
    %v31 = vpop.permute.xlu0 %30
    %vm32 = vcmask 851712
    %33 = vst.msk [vmem:[#allocation0] ss:$8 sm:$0x3] %vm32, %v31
    %s34 = scalar_lea.vmem %s0, 11
    %s35 = smov 3
    %v36 = vld [vmem:[%s34] ss:$16 sm:%s35]
    %37 = vrot.lane.b32.xlu0 %v36, 88
    %v38 = vpop.permute.xlu0 %37
    %vm39 = vcmask 786112
    %40 = vst.msk [vmem:[#allocation0] ss:$8 sm:$0x3] %vm39, %v38
    %s41 = scalar_lea.vmem %s0, 10
    %s42 = smov 3
    %v43 = vld [vmem:[%s41] ss:$16 sm:%s42]
    %44 = vrot.lane.b32.xlu0 %v43, 80
    %v45 = vpop.permute.xlu0 %44
    %vm46 = vcmask 720512
    %47 = vst.msk [vmem:[#allocation0] ss:$8 sm:$0x3] %vm46, %v45
    %s48 = scalar_lea.vmem %s0, 9
    %s49 = smov 3
    %v50 = vld [vmem:[%s48] ss:$16 sm:%s49]
    %51 = vrot.lane.b32.xlu0 %v50, 72
    %v52 = vpop.permute.xlu0 %51
    %vm53 = vcmask 654912
    %54 = vst.msk [vmem:[#allocation0] ss:$8 sm:$0x3] %vm53, %v52
    %s55 = scalar_lea.vmem %s0, 8
    %s56 = smov 3
    %v57 = vld [vmem:[%s55] ss:$16 sm:%s56]
    %58 = vrot.lane.b32.xlu0 %v57, 64
    %v59 = vpop.permute.xlu0 %58
    %vm60 = vcmask 589312
    %61 = vst.msk [vmem:[#allocation0] ss:$8 sm:$0x3] %vm60, %v59
    %s62 = scalar_lea.vmem %s0, 7
    %s63 = smov 3
    %v64 = vld [vmem:[%s62] ss:$16 sm:%s63]
    %65 = vrot.lane.b32.xlu0 %v64, 56
    %v66 = vpop.permute.xlu0 %65
    %vm67 = vcmask 523712
    %68 = vst.msk [vmem:[#allocation0] ss:$8 sm:$0x3] %vm67, %v66
    %s69 = scalar_lea.vmem %s0, 6
    %s70 = smov 3
    %v71 = vld [vmem:[%s69] ss:$16 sm:%s70]
    %72 = vrot.lane.b32.xlu0 %v71, 48
    %v73 = vpop.permute.xlu0 %72
    %vm74 = vcmask 458112
    %75 = vst.msk [vmem:[#allocation0] ss:$8 sm:$0x3] %vm74, %v73
    %s76 = scalar_lea.vmem %s0, 5
    %s77 = smov 3
    %v78 = vld [vmem:[%s76] ss:$16 sm:%s77]
    %79 = vrot.lane.b32.xlu0 %v78, 40
    %v80 = vpop.permute.xlu0 %79
    %vm81 = vcmask 392512
    %82 = vst.msk [vmem:[#allocation0] ss:$8 sm:$0x3] %vm81, %v80
    %s83 = scalar_lea.vmem %s0, 4
    %s84 = smov 3
    %v85 = vld [vmem:[%s83] ss:$16 sm:%s84]
    %86 = vrot.lane.b32.xlu0 %v85, 32
    %v87 = vpop.permute.xlu0 %86
    %vm88 = vcmask 326912
    %89 = vst.msk [vmem:[#allocation0] ss:$8 sm:$0x3] %vm88, %v87
    %s90 = scalar_lea.vmem %s0, 3
    %s91 = smov 3
    %v92 = vld [vmem:[%s90] ss:$16 sm:%s91]
    %93 = vrot.lane.b32.xlu0 %v92, 24
    %v94 = vpop.permute.xlu0 %93
    %vm95 = vcmask 261312
    %96 = vst.msk [vmem:[#allocation0] ss:$8 sm:$0x3] %vm95, %v94
    %s97 = scalar_lea.vmem %s0, 2
    %s98 = smov 3
    %v99 = vld [vmem:[%s97] ss:$16 sm:%s98]
    %100 = vrot.lane.b32.xlu0 %v99, 16
    %v101 = vpop.permute.xlu0 %100
    %vm102 = vcmask 195712
    %103 = vst.msk [vmem:[#allocation0] ss:$8 sm:$0x3] %vm102, %v101
    %s104 = scalar_lea.vmem %s0, 1
    %s105 = smov 3
    %v106 = vld [vmem:[%s104] ss:$16 sm:%s105]
    %107 = vrot.lane.b32.xlu0 %v106, 8
    %v108 = vpop.permute.xlu0 %107
    %vm109 = vcmask 130112
    %110 = vst.msk [vmem:[#allocation0] ss:$8 sm:$0x3] %vm109, %v108
    %s112 = sshllo.u32 0, 1
    %v114 = vld [vmem:[#allocation0] sm:%s112]
    %s115 = sshllo.u32 0, 1
    %116 = vst [vmem:[%s1] sm:%s115] %v114
    %s117 = scalar_lea.vmem [#allocation0], 8
    %v118 = vld [vmem:[%s117] sm:%s112]
    %s119 = sshllo.u32 0, 1
    %s120 = scalar_lea.vmem %s1, 1
    %121 = vst [vmem:[%s120] sm:%s119] %v118

// kernel: scn_forward.1
$region0: #{scn_forward.1}
  #allocation0 [shape = 'u32[]', space=smem, size = 0x4, offset = 0x4, fixed_abs, tag = 'smem constant byte address 0x4 - core index']
  #allocation1 [shape = 'u32[144,128]{1,0:T(1,128)}', space=vmem, size = 0x12000, scoped, tag = 'internal scratch']
  #allocation2 [shape = 'f32[2,8,128]{2,1,0:T(8,128)}', space=vmem, size = 0x2000, scoped, tag = 'scratch operand']
  %s0 = inlined_call_operand.vmem [shape: f32[4,4,8,128], index: 0, kind: input, shape index: {}]
  %s1 = inlined_call_operand.vmem [shape: bf16[3,128,256], index: 1, kind: input, shape index: {}]
  %s2 = inlined_call_operand.vmem [shape: f32[1,256], index: 2, kind: input, shape index: {}]
  %s3 = inlined_call_operand.vmem [shape: f32[4,4,8,256], index: 3, kind: output, shape index: {}]
  %s4 = sld [smem:[#allocation0]]
  $region49: #{scn_forward.1} parent=0
    _
  %s6 = ssub.s32 1, %s4
  %s7 = scalar_select 0, %s6, %s4
  loop: start=0, step=1, limit=10
  $region2: #{scn_forward.1} parent=0 // loop_pre_header
    _
  $region3: #{scn_forward.1} parent=0 // loop_header
    %s9 = sphi 0, %s13
    %p10 = scmp.ge.s32.totalorder %s9, 10
    %s16 = sphi 0, %s28
    %s17 = sphi 0, %s24
    %s18 = sphi 0, %s16
    %s19 = sphi 0, %s17
    %s20 = sphi 0, %s18
    %s21 = sphi 0, %s19
    %s33 = sphi 0, %s35
    %s36 = sphi 0, %s33
    %s37 = sphi 0, %s36
    %s53 = sphi 0, %s37
    %s57 = sphi 0, %s57
    %s59 = sphi 0, %s57
    %s60 = sphi 0, %s59
    %s74 = sphi 0, %s60
    %s78 = sphi 0, %s78
    %s80 = sphi 0, %s78
    %s81 = sphi 0, %s80
    %s95 = sphi 0, %s81
    %s103 = sphi 0, %s105
    %s106 = sphi 0, %s103
    %s107 = sphi 0, %s106
    %s123 = sphi 0, %s107
  $region4: #{scn_forward.1} parent=0 // loop_header_branch
    %12 = sbr.rel (%p10) target = $region8
  $region5: #{scn_forward.1} parent=0 // loop_body
    %s14 = ssub.s32 %s9, 1
    %s15 = ssub.s32 %s9, 2
    %s22 = sadd.s32 1, %s17
    %p23 = scmp.ge.s32.totalorder %s22, 4
    %s24 = scalar_select %p23, 0, %s22
    %s25 = sadd.s32 1, %s16
    %s26 = scalar_select %p23, %s25, %s16
    %p27 = scmp.ge.s32.totalorder %s26, 2
    %s28 = scalar_select %p27, 0, %s26
    %s29 = ssub.s32 %s17, %s24
    %s30 = ssub.s32 %s16, %s28
    %s31 = sor.u32 %s29, %s30
    %p32 = scmp.eq.s32.totalorder %s31, 0
    %s34 = sadd.s32 %s33, 1
    %s35 = scalar_select %p32, %s33, %s34
    %p38 = pneg %p32
    %p39 = scmp.eq.s32.totalorder %s9, 7
    %p40 = por %p38, %p39
    %p41 = scmp.ne.s32.totalorder %s33, %s36
    %p42 = scmp.eq.s32.totalorder %s9, 0
    %p43 = por %p41, %p42
    %p44 = scmp.ne.s32.totalorder %s33, %s36
    %p45 = scmp.eq.s32.totalorder %s14, 7
    %p46 = por %p44, %p45
    %p47 = scmp.ne.s32.totalorder %s36, %s37
    %p48 = scmp.eq.s32.totalorder %s14, 0
    %p49 = por %p47, %p48
    %p50 = scmp.ne.s32.totalorder %s36, %s37
    %p51 = scmp.eq.s32.totalorder %s15, 7
    %p52 = por %p50, %p51
    %p54 = scmp.ne.s32.totalorder %s37, %s53
    %p55 = scmp.eq.s32.totalorder %s15, 0
    %p56 = por %p54, %p55
    %s58 = sadd.s32 %s57, 1
    %p61 = scmp.eq.s32.totalorder %s9, 7
    %p62 = scmp.ne.s32.totalorder %s57, %s59
    %p63 = scmp.eq.s32.totalorder %s9, 0
    %p64 = por %p62, %p63
    %p65 = scmp.ne.s32.totalorder %s57, %s59
    %p66 = scmp.eq.s32.totalorder %s14, 7
    %p67 = por %p65, %p66
    %p68 = scmp.ne.s32.totalorder %s59, %s60
    %p69 = scmp.eq.s32.totalorder %s14, 0
    %p70 = por %p68, %p69
    %p71 = scmp.ne.s32.totalorder %s59, %s60
    %p72 = scmp.eq.s32.totalorder %s15, 7
    %p73 = por %p71, %p72
    %p75 = scmp.ne.s32.totalorder %s60, %s74
    %p76 = scmp.eq.s32.totalorder %s15, 0
    %p77 = por %p75, %p76
    %s79 = sadd.s32 %s78, 1
    %p82 = scmp.eq.s32.totalorder %s9, 7
    %p83 = scmp.ne.s32.totalorder %s78, %s80
    %p84 = scmp.eq.s32.totalorder %s9, 0
    %p85 = por %p83, %p84
    %p86 = scmp.ne.s32.totalorder %s78, %s80
    %p87 = scmp.eq.s32.totalorder %s14, 7
    %p88 = por %p86, %p87
    %p89 = scmp.ne.s32.totalorder %s80, %s81
    %p90 = scmp.eq.s32.totalorder %s14, 0
    %p91 = por %p89, %p90
    %p92 = scmp.ne.s32.totalorder %s80, %s81
    %p93 = scmp.eq.s32.totalorder %s15, 7
    %p94 = por %p92, %p93
    %p96 = scmp.ne.s32.totalorder %s81, %s95
    %p97 = scmp.eq.s32.totalorder %s15, 0
    %p98 = por %p96, %p97
    %s99 = ssub.s32 %s17, %s24
    %s100 = ssub.s32 %s16, %s28
    %s101 = sor.u32 %s99, %s100
    %p102 = scmp.eq.s32.totalorder %s101, 0
    %s104 = sadd.s32 %s103, 1
    %s105 = scalar_select %p102, %s103, %s104
    %p108 = pneg %p102
    %p109 = scmp.eq.s32.totalorder %s9, 7
    %p110 = por %p108, %p109
    %p111 = scmp.ne.s32.totalorder %s103, %s106
    %p112 = scmp.eq.s32.totalorder %s9, 0
    %p113 = por %p111, %p112
    %p114 = scmp.ne.s32.totalorder %s103, %s106
    %p115 = scmp.eq.s32.totalorder %s14, 7
    %p116 = por %p114, %p115
    %p117 = scmp.ne.s32.totalorder %s106, %s107
    %p118 = scmp.eq.s32.totalorder %s14, 0
    %p119 = por %p117, %p118
    %p120 = scmp.ne.s32.totalorder %s106, %s107
    %p121 = scmp.eq.s32.totalorder %s15, 7
    %p122 = por %p120, %p121
    %p124 = scmp.ne.s32.totalorder %s107, %s123
    %p125 = scmp.eq.s32.totalorder %s15, 0
    %p126 = por %p124, %p125
    %p127 = scmp.le.s32.totalorder 1, %s9
    %p128 = scmp.lt.s32.totalorder %s9, 9
    %p129 = pnand %p127, %p128
    %p130 = pneg %p129
    // Predicated region
    $region9: #{scn_forward.1} parent=5 // pred_check
      _
    $region10: #{scn_forward.1} parent=5 // pred_check_branch
      %132 = sbr.rel (%p129) target = $region12
    $region11: #{scn_forward.1} parent=5 // pred_region
      %s133 = ssub.s32 %s9, 1
      // Predicated region
      $region13: #{scn_forward.1} parent=11 // pred_check
        %p134 = pneg %p70
      $region14: #{scn_forward.1} parent=11 // pred_check_branch
        %136 = sbr.rel (%p134) target = $region16
      $region15: #{scn_forward.1} parent=11 // pred_region
        _
      $region16: #{scn_forward.1} parent=11 // pred_fallthru
        _
      // Predicated region
      $region17: #{scn_forward.1} parent=11 // pred_check
        %p137 = pneg %p91
      $region18: #{scn_forward.1} parent=11 // pred_check_branch
        %139 = sbr.rel (%p137) target = $region20
      $region19: #{scn_forward.1} parent=11 // pred_region
        _
      $region20: #{scn_forward.1} parent=11 // pred_fallthru
        _
    $region12: #{scn_forward.1} parent=5 // pred_fallthru
      _
    %p140 = scmp.lt.s32.totalorder %s9, 8
    // Predicated region
    $region21: #{scn_forward.1} parent=5 // pred_check
      %p141 = pneg %p140
    $region22: #{scn_forward.1} parent=5 // pred_check_branch
      %143 = sbr.rel (%p141) target = $region24
    $region23: #{scn_forward.1} parent=5 // pred_region
      // Predicated region
      $region25: #{scn_forward.1} parent=23 // pred_check
        %p144 = pneg %p43
      $region26: #{scn_forward.1} parent=23 // pred_check_branch
        %146 = sbr.rel (%p144) target = $region28
      $region27: #{scn_forward.1} parent=23 // pred_region
        %s147 = smul.u32 2, %s16
        %p148 = scmp.lt.s32.totalorder %s17, 3
        %s149 = scalar_select %p148, %s17, 3
        %p150 = scmp.lt.s32.totalorder %s147, 3
        %s151 = scalar_select %p150, %s147, 3
        %s152 = smul.addr %s149, 4
        %s153 = sadd.s32 %s151, %s152
        %s154 = smul.addr %s153, 8
        %s155 = scalar_lea.vmem %s0, %s154
        %s156 = smul.u32 2, %s16
      $region28: #{scn_forward.1} parent=23 // pred_fallthru
        _
    $region24: #{scn_forward.1} parent=5 // pred_fallthru
      _
    %p157 = scmp.le.s32.totalorder 1, %s9
    %p158 = scmp.lt.s32.totalorder %s9, 9
    %p159 = pnand %p157, %p158
    %p160 = pneg %p159
    // Predicated region
    $region29: #{scn_forward.1} parent=5 // pred_check
      _
    $region30: #{scn_forward.1} parent=5 // pred_check_branch
      %162 = sbr.rel (%p159) target = $region32
    $region31: #{scn_forward.1} parent=5 // pred_region
      %s163 = ssub.s32 %s9, 1
      %s164 = smul.u32 2, %s18
      %p165 = scmp.lt.s32.totalorder %s19, 3
      %s166 = scalar_select %p165, %s19, 3
      %p167 = scmp.lt.s32.totalorder %s164, 3
      %s168 = scalar_select %p167, %s164, 3
      %s169 = smul.addr %s166, 4
      %s170 = sadd.s32 %s168, %s169
      %s171 = smul.addr %s170, 8
      %s172 = scalar_lea.vmem %s0, %s171
      %p173 = pneg %p49
      %p174 = pneg %p46
      %p175 = pneg %p70
      %p176 = pneg %p67
      %p177 = pneg %p91
      %p178 = pneg %p88
      %p179 = pneg %p119
      %p180 = pneg %p116
      %s181 = smul.u32 2, %s18
      %p182 = scmp.lt.s32.totalorder %s19, 3
      %s183 = scalar_select %p182, %s19, 3
      %p184 = scmp.lt.s32.totalorder %s181, 3
      %s185 = scalar_select %p184, %s181, 3
      %s186 = smul.addr %s185, 2
      %s187 = smul.addr %s183, 8
      %s188 = sadd.s32 %s186, %s187
      %s189 = smul.addr %s188, 8
      %s190 = scalar_lea.vmem %s3, %s189
      %s191 = smul.u32 2, %s18
      %p192 = scmp.lt.s32.totalorder %s19, 3
      %s193 = scalar_select %p192, %s19, 3
      %p194 = scmp.lt.s32.totalorder %s191, 3
      %s195 = scalar_select %p194, %s191, 3
      %s196 = smul.addr %s193, 4
      %s197 = sadd.s32 %s195, %s196
      %s198 = smul.addr %s197, 8
      %s199 = scalar_lea.vmem %s0, %s198
      %s200 = smul.u32 2, %s18
      %s201 = smul.u32 2, %s18
      %p202 = scmp.lt.s32.totalorder %s19, 3
      %s203 = scalar_select %p202, %s19, 3
      %p204 = scmp.lt.s32.totalorder %s201, 3
      %s205 = scalar_select %p204, %s201, 3
      %s206 = smul.addr %s205, 2
      %s207 = smul.addr %s203, 8
      %s208 = sadd.s32 %s206, %s207
      %s209 = smul.addr %s208, 8
      %s210 = scalar_lea.vmem %s3, %s209
      %s211 = smul.u32 2, %s18
      %p213 = scmp.eq.s32.totalorder %s19, 0
      // Predicated region
      $region33: #{scn_forward.1} parent=31 // pred_check
        %p214 = pneg %p213
      $region34: #{scn_forward.1} parent=31 // pred_check_branch
        %216 = sbr.rel (%p214) target = $region36
      $region35: #{scn_forward.1} parent=31 // pred_region
        %217 = vst [vmem:[#allocation2] sm:$0xff] 0.0
        %218 = vst [vmem:[#allocation2 + $0x8] sm:$0xff] 0.0
      $region36: #{scn_forward.1} parent=31 // pred_fallthru
        _
      %v219 = vld [vmem:[#allocation2] sm:$0xff]
      %v220 = vld [vmem:[#allocation2 + $0x8] sm:$0xff]
      %v221 = vmul.f32 %v219, 0.5
      %v222 = vmul.f32 %v220, 0.5
      %v223 = vld [vmem:[%s199] sm:$0xff]
      %v224 = vld [vmem:[%s199 + $0x8] sm:$0xff]
      %v225 = vadd.f32 %v221, %v223
      %v226 = vadd.f32 %v222, %v224
      %vm227 = vcmp.ge.f32.partialorder %v225, 1.0
      %vm228 = vcmp.ge.f32.partialorder %v226, 1.0
      %v229 = vsel %vm227, 0.0, %v225
      %v230 = vsel %vm228, 0.0, %v226
      %231 = vst [vmem:[#allocation2] sm:$0xff] %v229
      %232 = vst [vmem:[#allocation2 + $0x8] sm:$0xff] %v230
      %v233 = vsel %vm227, 1, 0
      %v234 = vsel %vm228, 1, 0
      %v235 = vcvt.s32.f32 %v233
      %v236 = vcvt.s32.f32 %v234
      %v237 = vlaneseq
      %v238 = vshrl.u32 %v237, 7
      %v239 = vadd.s32 %v238, 8
      %vm240 = vcmp.lt.s32.totalorder %v238, 0
      %v241 = vsub.s32 0, %v238
      %v242 = vsel %vm240, %v241, %v238
      %v243 = vshrl.u32 %v242, 3
      %v244 = vand.u32 %v242, 7
      %v245 = vsub.s32 0, %v244
      %v246 = vsel %vm240, %v245, %v244
      %vm247 = vcmp.lt.s32.totalorder %v239, 0
      %v248 = vsub.s32 0, %v239
      %v249 = vsel %vm247, %v248, %v239
      %v250 = vshrl.u32 %v249, 3
      %v251 = vand.u32 %v249, 7
      %v252 = vsub.s32 0, %v251
      %v253 = vsel %vm247, %v252, %v251
      %vm254 = vcmp.ne.s32.totalorder %v246, 0
      %vm255 = vcmp.ne.s32.totalorder %v253, 0
      %vm256 = vcmp.lt.s32.totalorder %v246, 0
      %vm257 = vcmp.lt.s32.totalorder %v253, 0
      %vm258 = vmand %vm256, %vm254
      %vm259 = vmand %vm257, %vm255
      %v260 = vadd.s32 %v246, 8
      %v261 = vadd.s32 %v253, 8
      %v262 = vsel %vm258, %v260, %v246
      %v263 = vsel %vm259, %v261, %v253
      %vm264 = vcmp.eq.s32.totalorder %v262, 0
      %vm265 = vcmp.eq.s32.totalorder %v263, 0
      %v266 = vrot.slane %v235, 7
      %v267 = vrot.slane %v236, 7
      %vm268 = vcmp.lt.s32.totalorder %v238, 1
      %v269 = vsel %vm268, %v266, %v267
      %v270 = vsel %vm268, %v267, %v266
      %v271 = vsel %vm264, 0.0, %v270
      %v272 = vsel %vm265, 0.0, %v269
      %vm273 = vcmp.eq.s32.totalorder %v262, 7
      %vm274 = vcmp.eq.s32.totalorder %v263, 7
      %v275 = vrot.slane %v235, 1
      %v276 = vrot.slane %v236, 1
      %vm277 = vcmp.lt.s32.totalorder %v238, 7
      %v278 = vsel %vm277, %v275, %v276
      %v279 = vsel %vm277, %v276, %v275
      %v280 = vsel %vm273, 0.0, %v278
      %v281 = vsel %vm274, 0.0, %v279
      %v282 = vpack.c.bf16 %v272, %v271
      %v283 = vld [vmem:[%s1] sm:$0xff]
      %v284 = vld [vmem:[%s1 + $0x8] sm:$0xff]
      %v285 = vld [vmem:[%s1 + $0x10] sm:$0xff]
      %v286 = vld [vmem:[%s1 + $0x18] sm:$0xff]
      %v287 = vld [vmem:[%s1 + $0x20] sm:$0xff]
      %v288 = vld [vmem:[%s1 + $0x28] sm:$0xff]
      %v289 = vld [vmem:[%s1 + $0x30] sm:$0xff]
      %v290 = vld [vmem:[%s1 + $0x38] sm:$0xff]
      %v291 = vld [vmem:[%s1 + $0x40] sm:$0xff]
      %v292 = vld [vmem:[%s1 + $0x48] sm:$0xff]
      %v293 = vld [vmem:[%s1 + $0x50] sm:$0xff]
      %v294 = vld [vmem:[%s1 + $0x58] sm:$0xff]
      %v295 = vld [vmem:[%s1 + $0x60] sm:$0xff]
      %v296 = vld [vmem:[%s1 + $0x68] sm:$0xff]
      %v297 = vld [vmem:[%s1 + $0x70] sm:$0xff]
      %v298 = vld [vmem:[%s1 + $0x78] sm:$0xff]
      %v299 = vpack.c.bf16 %v236, %v235
      %s300 = scalar_lea.vmem %s1, 128
      %v301 = vld [vmem:[%s300] sm:$0xff]
      %v302 = vld [vmem:[%s300 + $0x8] sm:$0xff]
      %v303 = vld [vmem:[%s300 + $0x10] sm:$0xff]
      %v304 = vld [vmem:[%s300 + $0x18] sm:$0xff]
      %v305 = vld [vmem:[%s300 + $0x20] sm:$0xff]
      %v306 = vld [vmem:[%s300 + $0x28] sm:$0xff]
      %v307 = vld [vmem:[%s300 + $0x30] sm:$0xff]
      %v308 = vld [vmem:[%s300 + $0x38] sm:$0xff]
      %v309 = vld [vmem:[%s300 + $0x40] sm:$0xff]
      %v310 = vld [vmem:[%s300 + $0x48] sm:$0xff]
      %v311 = vld [vmem:[%s300 + $0x50] sm:$0xff]
      %v312 = vld [vmem:[%s300 + $0x58] sm:$0xff]
      %v313 = vld [vmem:[%s300 + $0x60] sm:$0xff]
      %v314 = vld [vmem:[%s300 + $0x68] sm:$0xff]
      %v315 = vld [vmem:[%s300 + $0x70] sm:$0xff]
      %v316 = vld [vmem:[%s300 + $0x78] sm:$0xff]
      %v333 = vunpack.c.l.b16 %v301
      %v334 = vunpack.c.h.b16 %v301
      %v335 = vunpack.c.l.b16 %v302
      %v336 = vunpack.c.h.b16 %v302
      %v337 = vunpack.c.l.b16 %v303
      %v338 = vunpack.c.h.b16 %v303
      %v339 = vunpack.c.l.b16 %v304
      %v340 = vunpack.c.h.b16 %v304
      %v341 = vunpack.c.l.b16 %v305
      %v342 = vunpack.c.h.b16 %v305
      %v343 = vunpack.c.l.b16 %v306
      %v344 = vunpack.c.h.b16 %v306
      %v345 = vunpack.c.l.b16 %v307
      %v346 = vunpack.c.h.b16 %v307
      %v347 = vunpack.c.l.b16 %v308
      %v348 = vunpack.c.h.b16 %v308
      %v349 = vunpack.c.l.b16 %v309
      %v350 = vunpack.c.h.b16 %v309
      %v351 = vunpack.c.l.b16 %v310
      %v352 = vunpack.c.h.b16 %v310
      %v353 = vunpack.c.l.b16 %v311
      %v354 = vunpack.c.h.b16 %v311
      %v355 = vunpack.c.l.b16 %v312
      %v356 = vunpack.c.h.b16 %v312
      %v357 = vunpack.c.l.b16 %v313
      %v358 = vunpack.c.h.b16 %v313
      %v359 = vunpack.c.l.b16 %v314
      %v360 = vunpack.c.h.b16 %v314
      %v361 = vunpack.c.l.b16 %v315
      %v362 = vunpack.c.h.b16 %v315
      %v363 = vunpack.c.l.b16 %v316
      %v364 = vunpack.c.h.b16 %v316
      %v365 = vpack.c.b16 %v335, %v333
      %v366 = vpack.c.b16 %v336, %v334
      %v367 = vpack.c.b16 %v339, %v337
      %v368 = vpack.c.b16 %v340, %v338
      %v369 = vpack.c.b16 %v343, %v341
      %v370 = vpack.c.b16 %v344, %v342
      %v371 = vpack.c.b16 %v347, %v345
      %v372 = vpack.c.b16 %v348, %v346
      %v373 = vpack.c.b16 %v351, %v349
      %v374 = vpack.c.b16 %v352, %v350
      %v375 = vpack.c.b16 %v355, %v353
      %v376 = vpack.c.b16 %v356, %v354
      %v377 = vpack.c.b16 %v359, %v357
      %v378 = vpack.c.b16 %v360, %v358
      %v379 = vpack.c.b16 %v363, %v361
      %v380 = vpack.c.b16 %v364, %v362
      %397 = vmatprep.subr.bf16.mxu0 %v366
      %398 = vmatpush1.bf16.msra.mxu0 %v365
      %399 = vmatprep.subr.bf16.mxu0 %v368
      %400 = vmatpush1.bf16.msra.mxu0 %v367
      %401 = vmatprep.subr.bf16.mxu0 %v370
      %402 = vmatpush1.bf16.msra.mxu0 %v369
      %403 = vmatprep.subr.bf16.mxu0 %v372
      %404 = vmatpush1.bf16.msra.mxu0 %v371
      %405 = vmatprep.subr.bf16.mxu0 %v374
      %406 = vmatpush1.bf16.msra.mxu0 %v373
      %407 = vmatprep.subr.bf16.mxu0 %v376
      %408 = vmatpush1.bf16.msra.mxu0 %v375
      %409 = vmatprep.subr.bf16.mxu0 %v378
      %410 = vmatpush1.bf16.msra.mxu0 %v377
      %411 = vmatprep.subr.bf16.mxu0 %v380
      %412 = vmatpush1.bf16.msra.mxu0 %v379
      %413 = vmatprep.subr.bf16.mxu0 0
      %414 = vmatpush1.bf16.msra.mxu0 0
      %415 = vmatprep.subr.bf16.mxu0 0
      %416 = vmatpush1.bf16.msra.mxu0 0
      %417 = vmatprep.subr.bf16.mxu0 0
      %418 = vmatpush1.bf16.msra.mxu0 0
      %419 = vmatprep.subr.bf16.mxu0 0
      %420 = vmatpush1.bf16.msra.mxu0 0
      %421 = vmatprep.subr.bf16.mxu0 0
      %422 = vmatpush1.bf16.msra.mxu0 0
      %423 = vmatprep.subr.bf16.mxu0 0
      %424 = vmatpush1.bf16.msra.mxu0 0
      %425 = vmatprep.subr.bf16.mxu0 0
      %426 = vmatpush1.bf16.msra.mxu0 0
      %427 = vmatprep.subr.bf16.mxu0 0
      %428 = vmatpush1.bf16.msra.mxu0 0
      %429 = vmatprep.mubr.bf16.mxu0 0
      %430 = vmatmul.mubr.bf16.gmra.mrb[0].mxu0 %v299
      %v431 = vpop.f32.mrb[0].mxu0
      %v432 = vadd.f32 0.0, %v431
      %v433 = vpop.f32.mrb[0].mxu0
      %v434 = vadd.f32 0.0, %v433
      %v435 = vpop.f32.mrb[0].mxu0
      %v436 = vadd.f32 0.0, %v435
      %v437 = vpop.f32.mrb[0].mxu0
      %v438 = vadd.f32 0.0, %v437
      %439 = vdwg.mxu0
      %v456 = vunpack.c.l.b16 %v283
      %v457 = vunpack.c.h.b16 %v283
      %v458 = vunpack.c.l.b16 %v284
      %v459 = vunpack.c.h.b16 %v284
      %v460 = vunpack.c.l.b16 %v285
      %v461 = vunpack.c.h.b16 %v285
      %v462 = vunpack.c.l.b16 %v286
      %v463 = vunpack.c.h.b16 %v286
      %v464 = vunpack.c.l.b16 %v287
      %v465 = vunpack.c.h.b16 %v287
      %v466 = vunpack.c.l.b16 %v288
      %v467 = vunpack.c.h.b16 %v288
      %v468 = vunpack.c.l.b16 %v289
      %v469 = vunpack.c.h.b16 %v289
      %v470 = vunpack.c.l.b16 %v290
      %v471 = vunpack.c.h.b16 %v290
      %v472 = vunpack.c.l.b16 %v291
      %v473 = vunpack.c.h.b16 %v291
      %v474 = vunpack.c.l.b16 %v292
      %v475 = vunpack.c.h.b16 %v292
      %v476 = vunpack.c.l.b16 %v293
      %v477 = vunpack.c.h.b16 %v293
      %v478 = vunpack.c.l.b16 %v294
      %v479 = vunpack.c.h.b16 %v294
      %v480 = vunpack.c.l.b16 %v295
      %v481 = vunpack.c.h.b16 %v295
      %v482 = vunpack.c.l.b16 %v296
      %v483 = vunpack.c.h.b16 %v296
      %v484 = vunpack.c.l.b16 %v297
      %v485 = vunpack.c.h.b16 %v297
      %v486 = vunpack.c.l.b16 %v298
      %v487 = vunpack.c.h.b16 %v298
      %v488 = vpack.c.b16 %v458, %v456
      %v489 = vpack.c.b16 %v459, %v457
      %v490 = vpack.c.b16 %v462, %v460
      %v491 = vpack.c.b16 %v463, %v461
      %v492 = vpack.c.b16 %v466, %v464
      %v493 = vpack.c.b16 %v467, %v465
      %v494 = vpack.c.b16 %v470, %v468
      %v495 = vpack.c.b16 %v471, %v469
      %v496 = vpack.c.b16 %v474, %v472
      %v497 = vpack.c.b16 %v475, %v473
      %v498 = vpack.c.b16 %v478, %v476
      %v499 = vpack.c.b16 %v479, %v477
      %v500 = vpack.c.b16 %v482, %v480
      %v501 = vpack.c.b16 %v483, %v481
      %v502 = vpack.c.b16 %v486, %v484
      %v503 = vpack.c.b16 %v487, %v485
      %520 = vmatprep.subr.bf16.mxu0 %v489
      %521 = vmatpush1.bf16.msra.mxu0 %v488
      %522 = vmatprep.subr.bf16.mxu0 %v491
      %523 = vmatpush1.bf16.msra.mxu0 %v490
      %524 = vmatprep.subr.bf16.mxu0 %v493
      %525 = vmatpush1.bf16.msra.mxu0 %v492
      %526 = vmatprep.subr.bf16.mxu0 %v495
      %527 = vmatpush1.bf16.msra.mxu0 %v494
      %528 = vmatprep.subr.bf16.mxu0 %v497
      %529 = vmatpush1.bf16.msra.mxu0 %v496
      %530 = vmatprep.subr.bf16.mxu0 %v499
      %531 = vmatpush1.bf16.msra.mxu0 %v498
      %532 = vmatprep.subr.bf16.mxu0 %v501
      %533 = vmatpush1.bf16.msra.mxu0 %v500
      %534 = vmatprep.subr.bf16.mxu0 %v503
      %535 = vmatpush1.bf16.msra.mxu0 %v502
      %536 = vmatprep.subr.bf16.mxu0 0
      %537 = vmatpush1.bf16.msra.mxu0 0
      %538 = vmatprep.subr.bf16.mxu0 0
      %539 = vmatpush1.bf16.msra.mxu0 0
      %540 = vmatprep.subr.bf16.mxu0 0
      %541 = vmatpush1.bf16.msra.mxu0 0
      %542 = vmatprep.subr.bf16.mxu0 0
      %543 = vmatpush1.bf16.msra.mxu0 0
      %544 = vmatprep.subr.bf16.mxu0 0
      %545 = vmatpush1.bf16.msra.mxu0 0
      %546 = vmatprep.subr.bf16.mxu0 0
      %547 = vmatpush1.bf16.msra.mxu0 0
      %548 = vmatprep.subr.bf16.mxu0 0
      %549 = vmatpush1.bf16.msra.mxu0 0
      %550 = vmatprep.subr.bf16.mxu0 0
      %551 = vmatpush1.bf16.msra.mxu0 0
      %552 = vmatprep.mubr.bf16.mxu0 0
      %553 = vmatmul.mubr.bf16.gmra.mrb[0].mxu0 %v282
      %v554 = vpop.f32.mrb[0].mxu0
      %v555 = vadd.f32 %v432, %v554
      %v556 = vpop.f32.mrb[0].mxu0
      %v557 = vadd.f32 %v434, %v556
      %v558 = vpop.f32.mrb[0].mxu0
      %v559 = vadd.f32 %v436, %v558
      %v560 = vpop.f32.mrb[0].mxu0
      %v561 = vadd.f32 %v438, %v560
      %562 = vdwg.mxu0
      %v563 = vpack.c.bf16 %v281, %v280
      %s564 = scalar_lea.vmem %s1, 256
      %v565 = vld [vmem:[%s564] sm:$0xff]
      %v566 = vld [vmem:[%s564 + $0x8] sm:$0xff]
      %v567 = vld [vmem:[%s564 + $0x10] sm:$0xff]
      %v568 = vld [vmem:[%s564 + $0x18] sm:$0xff]
      %v569 = vld [vmem:[%s564 + $0x20] sm:$0xff]
      %v570 = vld [vmem:[%s564 + $0x28] sm:$0xff]
      %v571 = vld [vmem:[%s564 + $0x30] sm:$0xff]
      %v572 = vld [vmem:[%s564 + $0x38] sm:$0xff]
      %v573 = vld [vmem:[%s564 + $0x40] sm:$0xff]
      %v574 = vld [vmem:[%s564 + $0x48] sm:$0xff]
      %v575 = vld [vmem:[%s564 + $0x50] sm:$0xff]
      %v576 = vld [vmem:[%s564 + $0x58] sm:$0xff]
      %v577 = vld [vmem:[%s564 + $0x60] sm:$0xff]
      %v578 = vld [vmem:[%s564 + $0x68] sm:$0xff]
      %v579 = vld [vmem:[%s564 + $0x70] sm:$0xff]
      %v580 = vld [vmem:[%s564 + $0x78] sm:$0xff]
      %v597 = vunpack.c.l.b16 %v565
      %v598 = vunpack.c.h.b16 %v565
      %v599 = vunpack.c.l.b16 %v566
      %v600 = vunpack.c.h.b16 %v566
      %v601 = vunpack.c.l.b16 %v567
      %v602 = vunpack.c.h.b16 %v567
      %v603 = vunpack.c.l.b16 %v568
      %v604 = vunpack.c.h.b16 %v568
      %v605 = vunpack.c.l.b16 %v569
      %v606 = vunpack.c.h.b16 %v569
      %v607 = vunpack.c.l.b16 %v570
      %v608 = vunpack.c.h.b16 %v570
      %v609 = vunpack.c.l.b16 %v571
      %v610 = vunpack.c.h.b16 %v571
      %v611 = vunpack.c.l.b16 %v572
      %v612 = vunpack.c.h.b16 %v572
      %v613 = vunpack.c.l.b16 %v573
      %v614 = vunpack.c.h.b16 %v573
      %v615 = vunpack.c.l.b16 %v574
      %v616 = vunpack.c.h.b16 %v574
      %v617 = vunpack.c.l.b16 %v575
      %v618 = vunpack.c.h.b16 %v575
      %v619 = vunpack.c.l.b16 %v576
      %v620 = vunpack.c.h.b16 %v576
      %v621 = vunpack.c.l.b16 %v577
      %v622 = vunpack.c.h.b16 %v577
      %v623 = vunpack.c.l.b16 %v578
      %v624 = vunpack.c.h.b16 %v578
      %v625 = vunpack.c.l.b16 %v579
      %v626 = vunpack.c.h.b16 %v579
      %v627 = vunpack.c.l.b16 %v580
      %v628 = vunpack.c.h.b16 %v580
      %v629 = vpack.c.b16 %v599, %v597
      %v630 = vpack.c.b16 %v600, %v598
      %v631 = vpack.c.b16 %v603, %v601
      %v632 = vpack.c.b16 %v604, %v602
      %v633 = vpack.c.b16 %v607, %v605
      %v634 = vpack.c.b16 %v608, %v606
      %v635 = vpack.c.b16 %v611, %v609
      %v636 = vpack.c.b16 %v612, %v610
      %v637 = vpack.c.b16 %v615, %v613
      %v638 = vpack.c.b16 %v616, %v614
      %v639 = vpack.c.b16 %v619, %v617
      %v640 = vpack.c.b16 %v620, %v618
      %v641 = vpack.c.b16 %v623, %v621
      %v642 = vpack.c.b16 %v624, %v622
      %v643 = vpack.c.b16 %v627, %v625
      %v644 = vpack.c.b16 %v628, %v626
      %661 = vmatprep.subr.bf16.mxu0 %v630
      %662 = vmatpush1.bf16.msra.mxu0 %v629
      %663 = vmatprep.subr.bf16.mxu0 %v632
      %664 = vmatpush1.bf16.msra.mxu0 %v631
      %665 = vmatprep.subr.bf16.mxu0 %v634
      %666 = vmatpush1.bf16.msra.mxu0 %v633
      %667 = vmatprep.subr.bf16.mxu0 %v636
      %668 = vmatpush1.bf16.msra.mxu0 %v635
      %669 = vmatprep.subr.bf16.mxu0 %v638
      %670 = vmatpush1.bf16.msra.mxu0 %v637
      %671 = vmatprep.subr.bf16.mxu0 %v640
      %672 = vmatpush1.bf16.msra.mxu0 %v639
      %673 = vmatprep.subr.bf16.mxu0 %v642
      %674 = vmatpush1.bf16.msra.mxu0 %v641
      %675 = vmatprep.subr.bf16.mxu0 %v644
      %676 = vmatpush1.bf16.msra.mxu0 %v643
      %677 = vmatprep.subr.bf16.mxu0 0
      %678 = vmatpush1.bf16.msra.mxu0 0
      %679 = vmatprep.subr.bf16.mxu0 0
      %680 = vmatpush1.bf16.msra.mxu0 0
      %681 = vmatprep.subr.bf16.mxu0 0
      %682 = vmatpush1.bf16.msra.mxu0 0
      %683 = vmatprep.subr.bf16.mxu0 0
      %684 = vmatpush1.bf16.msra.mxu0 0
      %685 = vmatprep.subr.bf16.mxu0 0
      %686 = vmatpush1.bf16.msra.mxu0 0
      %687 = vmatprep.subr.bf16.mxu0 0
      %688 = vmatpush1.bf16.msra.mxu0 0
      %689 = vmatprep.subr.bf16.mxu0 0
      %690 = vmatpush1.bf16.msra.mxu0 0
      %691 = vmatprep.subr.bf16.mxu0 0
      %692 = vmatpush1.bf16.msra.mxu0 0
      %693 = vmatprep.mubr.bf16.mxu0 0
      %694 = vmatmul.mubr.bf16.gmra.mrb[0].mxu0 %v563
      %v695 = vpop.f32.mrb[0].mxu0
      %v696 = vadd.f32 0.0, %v695
      %v697 = vpop.f32.mrb[0].mxu0
      %v698 = vadd.f32 0.0, %v697
      %v699 = vpop.f32.mrb[0].mxu0
      %v700 = vadd.f32 0.0, %v699
      %v701 = vpop.f32.mrb[0].mxu0
      %v702 = vadd.f32 0.0, %v701
      %703 = vdwg.mxu0
      %v704 = vadd.f32 %v555, %v696
      %v705 = vadd.f32 %v557, %v698
      %v706 = vadd.f32 %v559, %v700
      %v707 = vadd.f32 %v561, %v702
      %v708 = vld [vmem:[%s2] sm:$0x3]
      %v710 = vlaneseq
      %v711 = vshrl.u32 %v710, 7
      %v712 = vsub.s32 0, %v711
      %v713 = vrot.slane %v708, %v712
      %v714 = vlaneseq
      %v715 = vshrl.u32 %v714, 7
      %v716 = vsub.s32 1, %v715
      %v717 = vrot.slane %v708, %v716
      %v720 = vadd.f32 %v704, %v713
      %v721 = vadd.f32 %v705, %v717
      %v722 = vadd.f32 %v706, %v713
      %v723 = vadd.f32 %v707, %v717
      %724 = vst [vmem:[%s210] sm:$0xff] %v720
      %725 = vst [vmem:[%s210 + $0x8] sm:$0xff] %v721
      %726 = vst [vmem:[%s210 + $0x10] sm:$0xff] %v722
      %727 = vst [vmem:[%s210 + $0x18] sm:$0xff] %v723
      %s728 = smul.u32 2, %s18
      %p729 = scmp.lt.s32.totalorder %s19, 3
      %s730 = scalar_select %p729, %s19, 3
      %p731 = scmp.lt.s32.totalorder %s728, 3
      %s732 = scalar_select %p731, %s728, 3
      %s733 = smul.addr %s732, 2
      %s734 = smul.addr %s730, 8
      %s735 = sadd.s32 %s733, %s734
      %s736 = smul.addr %s735, 8
      %s737 = scalar_lea.vmem %s3, %s736
      // Predicated region
      $region37: #{scn_forward.1} parent=31 // pred_check
        %p738 = pneg %p116
      $region38: #{scn_forward.1} parent=31 // pred_check_branch
        %740 = sbr.rel (%p738) target = $region40
      $region39: #{scn_forward.1} parent=31 // pred_region
        %s741 = smul.u32 2, %s18
      $region40: #{scn_forward.1} parent=31 // pred_fallthru
        _
    $region32: #{scn_forward.1} parent=5 // pred_fallthru
      _
    %p742 = scmp.le.s32.totalorder 2, %s9
    // Predicated region
    $region41: #{scn_forward.1} parent=5 // pred_check
      %p743 = pneg %p742
    $region42: #{scn_forward.1} parent=5 // pred_check_branch
      %745 = sbr.rel (%p743) target = $region44
    $region43: #{scn_forward.1} parent=5 // pred_region
      %s746 = ssub.s32 %s9, 2
      // Predicated region
      $region45: #{scn_forward.1} parent=43 // pred_check
        %p747 = pneg %p122
      $region46: #{scn_forward.1} parent=43 // pred_check_branch
        %749 = sbr.rel (%p747) target = $region48
      $region47: #{scn_forward.1} parent=43 // pred_region
        %s750 = smul.u32 2, %s20
        %p751 = scmp.lt.s32.totalorder %s21, 3
        %s752 = scalar_select %p751, %s21, 3
        %p753 = scmp.lt.s32.totalorder %s750, 3
        %s754 = scalar_select %p753, %s750, 3
        %s755 = smul.addr %s754, 2
        %s756 = smul.addr %s752, 8
        %s757 = sadd.s32 %s755, %s756
        %s758 = smul.addr %s757, 8
        %s759 = scalar_lea.vmem %s3, %s758
      $region48: #{scn_forward.1} parent=43 // pred_fallthru
        _
    $region44: #{scn_forward.1} parent=5 // pred_fallthru
      _
  $region6: #{scn_forward.1} parent=0 // loop_footer
    %s13 = sadd.s32 1, %s9
  $region7: #{scn_forward.1} parent=0 // loop_footer_branch
    %8 = sbr.rel target = $region3
  $region8: #{scn_forward.1} parent=0 // loop_exit
    _

</llo_original>
